<compile_context>
chip_gen: v5e
topology: v5e:2x2
jax: 0.10.0
libtpu: 0.0.40
codegen_flags: <defaults>
</compile_context>

<pallas_src>
import functools
import math

import jax
import jax.numpy as jnp
from jax.experimental import pallas as pl
from jax.experimental.pallas import tpu as pltpu

_EPS = 1e-8
_SCALE = 60.0


# ----------------------------------------------------------------- utilities
def _cdiv(a, b):
    return -(-a // b)


def _vmem_plan():
    """Generation-aware (per-tile budget, vmem_limit_bytes)."""
    cap = 64 * 1024 * 1024  # conservative fallback (v7x per-TC VMEM)
    try:
        info = pltpu.get_tpu_info()
        cap = int(getattr(info, "vmem_capacity_bytes", cap)) or cap
    except Exception:
        pass
    tile_budget = max(8 * 1024 * 1024, cap // 4)          # ~16 MiB v7x / ~32 MiB v5e,v6e
    vmem_limit = min(int(cap * 0.75), 100 * 1024 * 1024)  # ~48 MiB v7x / ~96 MiB v5e,v6e
    return tile_budget, vmem_limit


def _plan(n, bytes_per_elem, tile_budget):
    """Pick (cols, rows, pad, row_tile) for a flat element count n.

    cols: largest of (1024,512,256,128) dividing n (prefer rows >= 8); only if
    n % 128 != 0 do we pad the tail (single fallback copy).  Row tile targets
    the VMEM budget; grid uses cdiv so no exact divisibility is required.
    """
    cols = None
    for c in (1024, 512, 256, 128):
        if n % c == 0 and n // c >= 8:
            cols = c
            break
    if cols is None:
        for c in (1024, 512, 256, 128):
            if n % c == 0:
                cols = c
                break
    pad = 0
    if cols is None:
        # TODO(synk): truly ragged n (not a multiple of 128) still incurs one
        # tail-pad copy of the inputs; everything else stays copy-free.
        cols = 128
        pad = (-n) % 128
    rows = (n + pad) // cols

    if rows <= 8:
        tr = rows
    else:
        tr = 8
        per_elem = bytes_per_elem * 2  # double-buffered in/out footprint
        for cand in (4096, 2048, 1024, 512, 256, 128, 64, 32, 16, 8):
            if cand * cols * per_elem <= tile_budget and _cdiv(rows, cand) >= 2:
                tr = cand
                break
    return cols, rows, pad, tr


def _pow(x, gamma):
    """x ** gamma; small integer gamma uses cheap repeated VPU multiplies."""
    g = float(gamma)
    if g == int(g) and 0 <= int(g) <= 8:
        k = int(g)
        if k == 0:
            return jnp.ones_like(x)
        r = x
        for _ in range(k - 1):
            r = r * x
        return r
    return jnp.power(x, gamma)


def _focal_elem(x, t, alpha, gamma):
    one_m_x = 1.0 - x
    pos = -t * alpha * _pow(one_m_x, gamma) * jnp.log(x + _EPS)
    neg = -(1.0 - t) * (1.0 - alpha) * _pow(x, gamma) * jnp.log(one_m_x + _EPS)
    return (pos + neg) * _SCALE


# ------------------------------------------------------------- Pallas kernels
def _focal_kernel(alpha, gamma, x_ref, t_ref, o_ref):
    # Native-dtype DMA, f32 compute, store directly in the output dtype.
    x = x_ref[...].astype(jnp.float32)
    t = t_ref[...].astype(jnp.float32)
    o_ref[...] = _focal_elem(x, t, alpha, gamma).astype(o_ref.dtype)


def _focal_sum_kernel(alpha, gamma, n, cols, tr, acc_rows, n_steps,
                      x_ref, t_ref, acc_ref):
    # Grid: (parallel cores, arbitrary steps). acc_ref is the resident output
    # block for this parallel index; accumulated with plain VPU adds.
    p = pl.program_id(0)
    i = pl.program_id(1)

    @pl.when(i == 0)
    def _():
        acc_ref[...] = jnp.zeros_like(acc_ref)

    x = x_ref[...].astype(jnp.float32)
    t = t_ref[...].astype(jnp.float32)
    loss = _focal_elem(x, t, alpha, gamma)

    # Mask anything beyond the n valid elements: partial-block garbage rows,
    # wrapper tail padding, and phantom (clamped) blocks all land here.  Uses
    # the *nominal* (unclamped) block id so phantom blocks contribute zero.
    blk = p * n_steps + i
    row0 = blk * tr
    full_rows = n // cols          # static
    rem = n % cols                 # static
    row_g = row0 + jax.lax.broadcasted_iota(jnp.int32, loss.shape, 0)
    if rem == 0:
        valid = row_g < full_rows
    else:
        col_g = jax.lax.broadcasted_iota(jnp.int32, loss.shape, 1)
        valid = (row_g < full_rows) | ((row_g == full_rows) & (col_g < rem))
    loss = jnp.where(valid, loss, 0.0)

    if tr == acc_rows:
        acc_ref[...] += loss
    else:
        # Fold groups of acc_rows(=8) rows with element-wise VPU adds.
        acc_ref[...] += loss.reshape(tr // acc_rows, acc_rows, cols).sum(axis=0)


# ------------------------------------------------------------------ wrapper
def focal_loss2(inputs, targets, *, alpha=0.25, gamma=2.0, logits=False, reduce=False):
    """Matches FocalLoss2.forward. `logits` is unused (as in the PyTorch forward)."""
    del logits
    orig_shape = inputs.shape
    out_dtype = jnp.result_type(inputs.dtype, targets.dtype)
    n = int(math.prod(orig_shape)) if orig_shape else 1

    tile_budget, vmem_limit = _vmem_plan()
    bytes_per_elem = (jnp.dtype(inputs.dtype).itemsize
                      + jnp.dtype(targets.dtype).itemsize
                      + jnp.dtype(out_dtype).itemsize)
    cols, rows, pad, tr = _plan(n, bytes_per_elem, tile_budget)

    # Free reshape (no copy) on the common path; pad only for ragged n.
    xf = inputs.reshape(-1)
    tf = targets.reshape(-1)
    if pad:
        xf = jnp.pad(xf, (0, pad))
        tf = jnp.pad(tf, (0, pad))
    x2 = xf.reshape(rows, cols)
    t2 = tf.reshape(rows, cols)

    num_blocks = _cdiv(rows, tr)
    alpha_f, gamma_f = float(alpha), float(gamma)

    if reduce:
        n_par = 2 if num_blocks >= 2 else 1          # split across TCs on v7x
        n_steps = _cdiv(num_blocks, n_par)
        acc_rows = 8 if tr % 8 == 0 else tr
        last_blk = num_blocks - 1

        def in_map(p, i):
            # Clamp phantom blocks into range; the kernel masks them to zero.
            return (jnp.minimum(p * n_steps + i, last_blk), 0)

        partials = pl.pallas_call(
            functools.partial(_focal_sum_kernel, alpha_f, gamma_f,
                              n, cols, tr, acc_rows, n_steps),
            out_shape=jax.ShapeDtypeStruct((n_par * acc_rows, cols), jnp.float32),
            grid_spec=pltpu.PrefetchScalarGridSpec(
                num_scalar_prefetch=0,
                grid=(n_par, n_steps),
                in_specs=[pl.BlockSpec((tr, cols), in_map),
                          pl.BlockSpec((tr, cols), in_map)],
                out_specs=pl.BlockSpec((acc_rows, cols), lambda p, i: (p, 0)),
            ),
            compiler_params=pltpu.CompilerParams(
                dimension_semantics=("parallel", "arbitrary"),
                vmem_limit_bytes=vmem_limit,
            ),
        )(x2, t2)
        # Tiny final cross-lane reduction (<= 2*8*1024 f32) in the wrapper.
        return (jnp.sum(partials) / float(n)).astype(out_dtype)

    out = pl.pallas_call(
        functools.partial(_focal_kernel, alpha_f, gamma_f),
        out_shape=jax.ShapeDtypeStruct((rows, cols), out_dtype),
        grid_spec=pltpu.PrefetchScalarGridSpec(
            num_scalar_prefetch=0,
            grid=(num_blocks,),
            in_specs=[pl.BlockSpec((tr, cols), lambda i: (i, 0)),
                      pl.BlockSpec((tr, cols), lambda i: (i, 0))],
            out_specs=pl.BlockSpec((tr, cols), lambda i: (i, 0)),
        ),
        compiler_params=pltpu.CompilerParams(
            dimension_semantics=("parallel",),
            vmem_limit_bytes=vmem_limit,
        ),
    )(x2, t2)

    if pad:
        return out.reshape(-1)[:n].reshape(orig_shape)
    return out.reshape(orig_shape)


# -------------------------------------------------------------------- main
if __name__ == "__main__":
    key = jax.random.PRNGKey(0)
    kx, kt = jax.random.split(key)

    B, C, H, W = 2, 4, 16, 16
    inputs = jax.random.uniform(kx, (B, C, H, W), jnp.float32)          # probabilities in [0,1)
    targets = (jax.random.uniform(kt, (B, C, H, W), jnp.float32) > 0.5).astype(jnp.float32)

    alpha, gamma = 0.25, 2.0

    # Pure-JAX reference (mirrors the PyTorch forward exactly).
    ref = (-targets * alpha * (1.0 - inputs) ** gamma * jnp.log(inputs + 1e-8)
           - (1.0 - targets) * (1.0 - alpha) * inputs ** gamma * jnp.log(1.0 - inputs + 1e-8)) * 60.0

    # reduce=False (module default): element-wise loss * 60
    loss_fn = jax.jit(functools.partial(focal_loss2, alpha=alpha, gamma=gamma, reduce=False))
    loss = loss_fn(inputs, targets)
    jax.block_until_ready(loss)
    assert loss.shape == (B, C, H, W), loss.shape
    assert bool(jnp.allclose(loss, ref, rtol=1e-4, atol=1e-3)), "elementwise mismatch"

    # reduce=True: fused in-kernel sum -> mean * 60
    loss_mean_fn = jax.jit(functools.partial(focal_loss2, alpha=alpha, gamma=gamma, reduce=True))
    loss_mean = loss_mean_fn(inputs, targets)
    jax.block_until_ready(loss_mean)
    assert bool(jnp.allclose(loss_mean, jnp.mean(ref), rtol=1e-4, atol=1e-3)), "reduced mismatch"

    print("KERNEL_OK")
</pallas_src>

<mosaic_0001>
module attributes {stable_mosaic.version = 11 : i64} {
  func.func @_focal_kernel(%arg0: i32, %arg1: memref<8x256xf32, #tpu.memory_space<vmem>>, %arg2: memref<8x256xf32, #tpu.memory_space<vmem>>, %arg3: memref<8x256xf32, #tpu.memory_space<vmem>>) attributes {dimension_semantics = [#tpu.dimension_semantics<parallel>], iteration_bounds = array<i64: 1>, scalar_prefetch = 0 : i64, scratch_operands = 0 : i64, tpu.core_type = #tpu.core_type<tc>, window_params = [{transform_indices = @transform_0, window_bounds = array<i64: 8, 256>}, {transform_indices = @transform_1, window_bounds = array<i64: 8, 256>}, {transform_indices = @transform_2, window_bounds = array<i64: 8, 256>}]} {
    %c0 = arith.constant 0 : index
    %c0_0 = arith.constant 0 : index
    %0 = vector.load %arg1[%c0, %c0_0] : memref<8x256xf32, #tpu.memory_space<vmem>>, vector<8x256xf32>
    %c0_1 = arith.constant 0 : index
    %c0_2 = arith.constant 0 : index
    %1 = vector.load %arg2[%c0_1, %c0_2] : memref<8x256xf32, #tpu.memory_space<vmem>>, vector<8x256xf32>
    %cst = arith.constant 1.000000e+00 : f32
    %2 = vector.broadcast %cst : f32 to vector<8x256xf32>
    %3 = arith.subf %2, %0 : vector<8x256xf32>
    %cst_3 = arith.constant 0.000000e+00 : f32
    %4 = vector.broadcast %cst_3 : f32 to vector<8x256xf32>
    %5 = arith.subf %4, %1 : vector<8x256xf32>
    %cst_4 = arith.constant 2.500000e-01 : f32
    %6 = vector.broadcast %cst_4 : f32 to vector<8x256xf32>
    %7 = arith.mulf %5, %6 : vector<8x256xf32>
    %8 = arith.mulf %3, %3 : vector<8x256xf32>
    %9 = arith.mulf %7, %8 : vector<8x256xf32>
    %cst_5 = arith.constant 9.99999993E-9 : f32
    %10 = vector.broadcast %cst_5 : f32 to vector<8x256xf32>
    %11 = arith.addf %0, %10 : vector<8x256xf32>
    %12 = math.log %11 : vector<8x256xf32>
    %13 = arith.mulf %9, %12 : vector<8x256xf32>
    %cst_6 = arith.constant 1.000000e+00 : f32
    %14 = vector.broadcast %cst_6 : f32 to vector<8x256xf32>
    %15 = arith.subf %14, %1 : vector<8x256xf32>
    %cst_7 = arith.constant 0.000000e+00 : f32
    %16 = vector.broadcast %cst_7 : f32 to vector<8x256xf32>
    %17 = arith.subf %16, %15 : vector<8x256xf32>
    %cst_8 = arith.constant 7.500000e-01 : f32
    %18 = vector.broadcast %cst_8 : f32 to vector<8x256xf32>
    %19 = arith.mulf %17, %18 : vector<8x256xf32>
    %20 = arith.mulf %0, %0 : vector<8x256xf32>
    %21 = arith.mulf %19, %20 : vector<8x256xf32>
    %cst_9 = arith.constant 9.99999993E-9 : f32
    %22 = vector.broadcast %cst_9 : f32 to vector<8x256xf32>
    %23 = arith.addf %3, %22 : vector<8x256xf32>
    %24 = math.log %23 : vector<8x256xf32>
    %25 = arith.mulf %21, %24 : vector<8x256xf32>
    %26 = arith.addf %13, %25 : vector<8x256xf32>
    %cst_10 = arith.constant 6.000000e+01 : f32
    %27 = vector.broadcast %cst_10 : f32 to vector<8x256xf32>
    %28 = arith.mulf %26, %27 : vector<8x256xf32>
    %c0_11 = arith.constant 0 : index
    %c0_12 = arith.constant 0 : index
    %29 = vector.load %arg3[%c0_11, %c0_12] : memref<8x256xf32, #tpu.memory_space<vmem>>, vector<8x256xf32>
    tpu.vector_store %arg3[%c0_11, %c0_12], %28 {strides = array<i32>} : memref<8x256xf32, #tpu.memory_space<vmem>>, vector<8x256xf32>,
    return
  }
  func.func @transform_0(%arg0: i32) -> (i32, i32) {
    %c0_i32 = arith.constant 0 : i32
    %c0_i32_0 = arith.constant 0 : i32
    return %arg0, %c0_i32 : i32, i32
  }
  func.func @transform_1(%arg0: i32) -> (i32, i32) {
    %c0_i32 = arith.constant 0 : i32
    %c0_i32_0 = arith.constant 0 : i32
    return %arg0, %c0_i32 : i32, i32
  }
  func.func @transform_2(%arg0: i32) -> (i32, i32) {
    %c0_i32 = arith.constant 0 : i32
    %c0_i32_0 = arith.constant 0 : i32
    return %arg0, %c0_i32 : i32, i32
  }
}

</mosaic_0001>

<llo_original>
// kernel: focal_loss2.1
$region0: #{focal_loss2.1}
  #allocation0 [shape = 'u32[]', space=smem, size = 0x4, offset = 0x4, fixed_abs, tag = 'smem constant byte address 0x4 - core index']
  #allocation1 [shape = 'u32[72,128]{1,0:T(1,128)}', space=vmem, size = 0x9000, scoped, tag = 'internal scratch']
  %s0 = inlined_call_operand.vmem [shape: f32[8,256], index: 0, kind: input, shape index: {}]
  %s1 = inlined_call_operand.vmem [shape: f32[8,256], index: 1, kind: input, shape index: {}]
  %s2 = inlined_call_operand.vmem [shape: f32[8,256], index: 2, kind: output, shape index: {}]
  %s3 = sld [smem:[#allocation0]]
  $region18: #{focal_loss2.1} parent=0
    _
  %s5 = ssub.s32 1, %s3
  %s6 = scalar_select 0, %s5, %s3
  // Predicated region
  $region2: #{focal_loss2.1} parent=0 // pred_check
    _
  $region3: #{focal_loss2.1} parent=0 // pred_check_branch
    %8 = sbr.rel (0) target = $region5
  $region4: #{focal_loss2.1} parent=0 // pred_region
    _
  $region5: #{focal_loss2.1} parent=0 // pred_fallthru
    _
  // Predicated region
  $region6: #{focal_loss2.1} parent=0 // pred_check
    _
  $region7: #{focal_loss2.1} parent=0 // pred_check_branch
    %10 = sbr.rel (0) target = $region9
  $region8: #{focal_loss2.1} parent=0 // pred_region
    _
  $region9: #{focal_loss2.1} parent=0 // pred_fallthru
    _
  %v11 = vld [vmem:[%s0] sm:$0xff]
  %v12 = vld [vmem:[%s0 + $0x8] sm:$0xff]
  %v13 = vld [vmem:[%s1] sm:$0xff]
  %v14 = vld [vmem:[%s1 + $0x8] sm:$0xff]
  %v15 = vsub.f32 1.0, %v11
  %v16 = vsub.f32 1.0, %v12
  %v17 = vsub.f32 0.0, %v13
  %v18 = vsub.f32 0.0, %v14
  %v19 = vmul.f32 %v17, 0.25
  %v20 = vmul.f32 %v18, 0.25
  %v21 = vmul.f32 %v15, %v15
  %v22 = vmul.f32 %v16, %v16
  %v23 = vmul.f32 %v19, %v21
  %v24 = vmul.f32 %v20, %v22
  %v25 = vadd.f32 %v11, 1e-08
  %v26 = vadd.f32 %v12, 1e-08
  %v27 = vlog2.pop %v25
  %v28 = vmul.f32 %v27, 0.6931472
  %v29 = vlog2.pop %v26
  %v30 = vmul.f32 %v29, 0.6931472
  %v31 = vmul.f32 %v23, %v28
  %v32 = vmul.f32 %v24, %v30
  %v33 = vsub.f32 1.0, %v13
  %v34 = vsub.f32 1.0, %v14
  %v35 = vsub.f32 0.0, %v33
  %v36 = vsub.f32 0.0, %v34
  %v37 = vmul.f32 %v35, 0.75
  %v38 = vmul.f32 %v36, 0.75
  %v39 = vmul.f32 %v11, %v11
  %v40 = vmul.f32 %v12, %v12
  %v41 = vmul.f32 %v37, %v39
  %v42 = vmul.f32 %v38, %v40
  %v43 = vadd.f32 %v15, 1e-08
  %v44 = vadd.f32 %v16, 1e-08
  %v45 = vlog2.pop %v43
  %v46 = vmul.f32 %v45, 0.6931472
  %v47 = vlog2.pop %v44
  %v48 = vmul.f32 %v47, 0.6931472
  %v49 = vmul.f32 %v41, %v46
  %v50 = vmul.f32 %v42, %v48
  %v51 = vadd.f32 %v31, %v49
  %v52 = vadd.f32 %v32, %v50
  %v53 = vmul.f32 %v51, 60.0
  %v54 = vmul.f32 %v52, 60.0
  %55 = vst [vmem:[%s2] sm:$0xff] %v53
  %56 = vst [vmem:[%s2 + $0x8] sm:$0xff] %v54
  // Predicated region
  $region10: #{focal_loss2.1} parent=0 // pred_check
    _
  $region11: #{focal_loss2.1} parent=0 // pred_check_branch
    %58 = sbr.rel (0) target = $region13
  $region12: #{focal_loss2.1} parent=0 // pred_region
    _
  $region13: #{focal_loss2.1} parent=0 // pred_fallthru
    _
  // Predicated region
  $region14: #{focal_loss2.1} parent=0 // pred_check
    _
  $region15: #{focal_loss2.1} parent=0 // pred_check_branch
    %60 = sbr.rel (0) target = $region17
  $region16: #{focal_loss2.1} parent=0 // pred_region
    _
  $region17: #{focal_loss2.1} parent=0 // pred_fallthru
    _

</llo_original>
